<compile_context>
chip_gen: v7x
topology: tpu7x:2x2x1
jax: 0.10.0
libtpu: 0.0.40
codegen_flags: <defaults>
</compile_context>

<pallas_src>
from typing import Any, Callable, Dict, List, Optional, Sequence, Tuple

import jax
import jax.numpy as jnp
from jax.experimental import pallas as pl
from jax.experimental.pallas import tpu as pltpu


# ----------------------------------------------------------------------------
# Pallas kernel: elementwise combine of one (ROW_BLK, hidden) tile.
# ----------------------------------------------------------------------------
def _add_kernel(a_ref, b_ref, o_ref):
    # Native-dtype add: HBM-bound on all generations; v6e/v7x have a native
    # bf16 VPU path, and on v5e Mosaic handles the widening internally.
    o_ref[...] = a_ref[...] + b_ref[...]


# ----------------------------------------------------------------------------
# Tiling helpers.
# ----------------------------------------------------------------------------
_TARGET_BLOCK_BYTES = 1 << 20  # ~1 MiB/array block: ~85% of HBM roofline
_MAX_BLOCK_BYTES = 2 << 20     # 3 arrays x 2 buffers -> <= ~12 MiB VMEM total


def _round_up(x: int, m: int) -> int:
    return ((x + m - 1) // m) * m


def _sublane_multiple(dtype) -> int:
    # f32 -> 8 sublanes, bf16/f16 -> 16, int8/fp8 -> 32 (packed sublane rows).
    return max(8, 32 // jnp.dtype(dtype).itemsize)


def _choose_row_block(total_rows: int, hidden: int, dtype) -> int:
    """Sublane-aligned row block targeting ~1 MiB (capped at 2 MiB) per tile."""
    align = _sublane_multiple(dtype)
    itemsize = jnp.dtype(dtype).itemsize
    row_bytes = max(hidden, 1) * itemsize
    rows_target = max(align, (_TARGET_BLOCK_BYTES // row_bytes) // align * align)
    rows_cap = max(align, (_MAX_BLOCK_BYTES // row_bytes) // align * align)
    rows = min(rows_target, rows_cap)
    # Never bigger than needed to cover the whole input in a single grid step.
    rows = min(rows, _round_up(max(total_rows, 1), align))
    # Note: for extremely wide rows (align * row_bytes > _MAX_BLOCK_BYTES) the
    # minimum one-sublane-group block may exceed the budget; such shapes would
    # additionally need hidden-dim tiling (not needed for this module's sizes).
    return max(rows, align)


# ----------------------------------------------------------------------------
# Tiled elementwise add over a single 2-D (rows, hidden) array.
# ----------------------------------------------------------------------------
def _tiled_add_2d(x: jnp.ndarray, y: jnp.ndarray, *, donate_x: bool = False) -> jnp.ndarray:
    assert x.ndim == 2 and x.shape == y.shape and x.dtype == y.dtype
    orig_shape = x.shape
    rows, hidden = x.shape

    # Lane-dense re-layout (elementwise add is layout-agnostic): present the
    # kernel a last dim that is a multiple of 128 so stores are unmasked.
    if hidden % 128 != 0 and (rows * hidden) % 128 == 0 and rows * hidden > 0:
        x = x.reshape(-1, 128)
        y = y.reshape(-1, 128)
        rows, hidden = x.shape

    row_blk = _choose_row_block(rows, hidden, x.dtype)
    grid = (pl.cdiv(rows, row_blk),)  # partial last block is masked by Pallas
    blk = (row_blk, hidden)
    itemsize = jnp.dtype(x.dtype).itemsize
    cost = pl.CostEstimate(
        flops=rows * hidden,
        transcendentals=0,
        bytes_accessed=3 * rows * hidden * itemsize,
    )

    out = pl.pallas_call(
        _add_kernel,
        out_shape=jax.ShapeDtypeStruct((rows, hidden), x.dtype),
        grid_spec=pl.GridSpec(
            grid=grid,
            in_specs=[
                pl.BlockSpec(blk, lambda i: (i, 0)),
                pl.BlockSpec(blk, lambda i: (i, 0)),
            ],
            out_specs=pl.BlockSpec(blk, lambda i: (i, 0)),
        ),
        compiler_params=pltpu.CompilerParams(
            # "parallel" shards multi-block grids across v7x's two TensorCores.
            # TODO(synk): if profiling shows only one TC active on v7x, switch
            # this axis to pltpu.CORE_PARALLEL.
            dimension_semantics=("parallel",),
        ),
        cost_estimate=cost,
        # Reuse the first input's HBM buffer for the output when the caller
        # has donated it (fused path: the concatenated LHS is a temporary).
        input_output_aliases=({0: 0} if donate_x else {}),
    )(x, y)

    return out.reshape(orig_shape) if out.shape != orig_shape else out


# ----------------------------------------------------------------------------
# Per-sample op with a fused (single-launch) fast path for many samples.
# ----------------------------------------------------------------------------
class PallasElementwiseAdd:
    """Per-sample op: elementwise a + b, backed by the tiled Pallas kernel.

    Args:
        row_bucket: if set, the concatenated total row count in the fused path
            is rounded up to a multiple of this value, bounding the number of
            distinct compiled shapes at the cost of a small tail-pad.
    """

    def __init__(self, row_bucket: Optional[int] = None):
        self.row_bucket = row_bucket

    def __repr__(self):
        return f"PallasElementwiseAdd(row_bucket={self.row_bucket!r})"

    def __call__(self, a: jnp.ndarray, b: jnp.ndarray) -> jnp.ndarray:
        assert a.ndim == 2 and a.shape == b.shape and a.dtype == b.dtype
        # Caller may still need `a`, so do not donate it here.
        return _tiled_add_2d(a, b, donate_x=False)

    def fused(
        self, elements_per_sample: Sequence[Tuple[jnp.ndarray, jnp.ndarray]]
    ) -> List[jnp.ndarray]:
        """Apply the per-sample op to every sample with ONE pallas_call.

        Concatenates all (seq_i, hidden) samples along the row axis, runs a
        single tiled kernel, and splits the result back per sample.  Falls
        back to per-sample calls if hidden / dtype differ across samples.
        """
        if len(elements_per_sample) == 0:
            return []
        a_list = [e[0] for e in elements_per_sample]
        b_list = [e[1] for e in elements_per_sample]
        for a, b in zip(a_list, b_list):
            assert a.ndim == 2 and a.shape == b.shape and a.dtype == b.dtype

        same_layout = (
            len({a.shape[1] for a in a_list}) == 1
            and len({str(a.dtype) for a in a_list}) == 1
        )
        if not same_layout:
            return [self(a, b) for a, b in zip(a_list, b_list)]

        seq_lens = [a.shape[0] for a in a_list]
        a_cat = jnp.concatenate(a_list, axis=0)
        b_cat = jnp.concatenate(b_list, axis=0)

        if self.row_bucket is not None and self.row_bucket > 0:
            bucketed = _round_up(a_cat.shape[0], self.row_bucket)
            if bucketed != a_cat.shape[0]:
                pad = bucketed - a_cat.shape[0]
                a_cat = jnp.pad(a_cat, ((0, pad), (0, 0)))
                b_cat = jnp.pad(b_cat, ((0, pad), (0, 0)))

        # a_cat is a kernel-local temporary -> donate it (output aliases it).
        out_cat = _tiled_add_2d(a_cat, b_cat, donate_x=True)

        results, off = [], 0
        for n in seq_lens:
            results.append(out_cat[off : off + n])
            off += n
        return results


# ----------------------------------------------------------------------------
# PerSampleReducer: same forward semantics as the PyTorch module.
# ----------------------------------------------------------------------------
class PerSampleReducer:
    """Applies a per-sample operation across multiple lists in a data dict."""

    def __init__(
        self,
        read_keys: List[str],
        write_key: str,
        per_sample_op: Callable[..., Any],
    ):
        self.read_keys = read_keys
        self.write_key = write_key
        self.per_sample_op = per_sample_op

    def __repr__(self):
        cls_name = self.__class__.__name__
        return (
            f"{cls_name}(\n  read_keys={self.read_keys!r},"
            f"\n  write_key={self.write_key!r},"
            f"\n  per_sample_op={self.per_sample_op!r}\n)"
        )

    def __call__(self, data_dict: Dict[str, Any]) -> Dict[str, Any]:
        lists = []
        for key in self.read_keys:
            if key not in data_dict:
                raise KeyError(f"Key '{key}' not found in data_dict.")
            if not isinstance(data_dict[key], list):
                raise TypeError(f"Value for key '{key}' must be a list.")
            lists.append(data_dict[key])

        list_lengths = [len(lst) for lst in lists]
        if len(set(list_lengths)) != 1:
            raise ValueError(
                "All lists corresponding to read_keys must have the same length."
            )
        length = list_lengths[0]

        elements_per_sample = [
            tuple(lst[i] for lst in lists) for i in range(length)
        ]

        # Fast path: ops exposing `.fused` combine all samples in one kernel
        # launch (same per-sample results, same ordering).
        fused = getattr(self.per_sample_op, "fused", None)
        if fused is not None and length > 0:
            result_list = list(fused(elements_per_sample))
        else:
            result_list = [
                self.per_sample_op(*elements) for elements in elements_per_sample
            ]

        data_dict[self.write_key] = result_list
        return data_dict


# ----------------------------------------------------------------------------
# Main
# ----------------------------------------------------------------------------
if __name__ == "__main__":
    key = jax.random.PRNGKey(0)
    hidden = 32
    # Variable-length per-sample elements (the whole point of a per-sample op).
    seq_lens = [8, 16, 24]

    a_list, b_list = [], []
    for seq in seq_lens:
        key, k1, k2 = jax.random.split(key, 3)
        a_list.append(jax.random.normal(k1, (seq, hidden), dtype=jnp.float32))
        b_list.append(jax.random.normal(k2, (seq, hidden), dtype=jnp.float32))

    data_dict = {"tok_a": a_list, "tok_b": b_list}

    reducer = PerSampleReducer(
        read_keys=["tok_a", "tok_b"],
        write_key="tok_sum",
        per_sample_op=PallasElementwiseAdd(),
    )

    out_dict = reducer(data_dict)
    results = out_dict["tok_sum"]
    jax.block_until_ready(results)

    # Correctness check against the pure-JAX reference of the per-sample op.
    for a, b, r in zip(a_list, b_list, results):
        ref = a + b
        assert r.shape == ref.shape and r.dtype == ref.dtype
        assert jnp.allclose(r, ref, atol=1e-6, rtol=1e-6)

    # Also exercise the direct (non-fused) per-sample path once.
    direct = reducer.per_sample_op(a_list[0], b_list[0])
    jax.block_until_ready(direct)
    assert jnp.allclose(direct, a_list[0] + b_list[0], atol=1e-6, rtol=1e-6)

    print("KERNEL_OK")
</pallas_src>

<mosaic_0001>
module attributes {stable_mosaic.version = 11 : i64} {
  func.func @_add_kernel(%arg0: i32, %arg1: memref<16x128xf32, #tpu.memory_space<vmem>>, %arg2: memref<16x128xf32, #tpu.memory_space<vmem>>, %arg3: memref<16x128xf32, #tpu.memory_space<vmem>>) attributes {dimension_semantics = [#tpu.dimension_semantics<parallel>], iteration_bounds = array<i64: 1>, scalar_prefetch = 0 : i64, scratch_operands = 0 : i64, tpu.core_type = #tpu.core_type<tc>, window_params = [{transform_indices = @transform_0, window_bounds = array<i64: 16, 128>}, {transform_indices = @transform_1, window_bounds = array<i64: 16, 128>}, {transform_indices = @transform_2, window_bounds = array<i64: 16, 128>}]} {
    %c0 = arith.constant 0 : index
    %c0_0 = arith.constant 0 : index
    %0 = vector.load %arg1[%c0, %c0_0] : memref<16x128xf32, #tpu.memory_space<vmem>>, vector<16x128xf32>
    %c0_1 = arith.constant 0 : index
    %c0_2 = arith.constant 0 : index
    %1 = vector.load %arg2[%c0_1, %c0_2] : memref<16x128xf32, #tpu.memory_space<vmem>>, vector<16x128xf32>
    %2 = arith.addf %0, %1 : vector<16x128xf32>
    %c0_3 = arith.constant 0 : index
    %c0_4 = arith.constant 0 : index
    %3 = vector.load %arg3[%c0_3, %c0_4] : memref<16x128xf32, #tpu.memory_space<vmem>>, vector<16x128xf32>
    tpu.vector_store %arg3[%c0_3, %c0_4], %2 {strides = array<i32>} : memref<16x128xf32, #tpu.memory_space<vmem>>, vector<16x128xf32>,
    return
  }
  func.func @transform_0(%arg0: i32) -> (i32, i32) {
    %c0_i32 = arith.constant 0 : i32
    %c0_i32_0 = arith.constant 0 : i32
    return %arg0, %c0_i32 : i32, i32
  }
  func.func @transform_1(%arg0: i32) -> (i32, i32) {
    %c0_i32 = arith.constant 0 : i32
    %c0_i32_0 = arith.constant 0 : i32
    return %arg0, %c0_i32 : i32, i32
  }
  func.func @transform_2(%arg0: i32) -> (i32, i32) {
    %c0_i32 = arith.constant 0 : i32
    %c0_i32_0 = arith.constant 0 : i32
    return %arg0, %c0_i32 : i32, i32
  }
}

</mosaic_0001>

<llo_original>
// kernel: tpu_custom_call.1
$region0: #{tpu_custom_call.1}
  #allocation0 [shape = 'u32[]', space=smem, size = 0x4, offset = 0x4, fixed_abs, tag = 'smem constant byte address 0x4 - core index']
  #allocation1 [shape = 'u32[144,128]{1,0:T(1,128)}', space=vmem, size = 0x12000, scoped, tag = 'internal scratch']
  %s0 = inlined_call_operand.hbm [shape: f32[12,128], index: 0, kind: input, shape index: {}, may-alias: {0,2}]
  %s1 = inlined_call_operand.vmem [shape: f32[12,128], index: 1, kind: input, shape index: {}]
  %s2 = inlined_call_operand.hbm [shape: f32[12,128], index: 2, kind: output, shape index: {}, may-alias: {0,2}]
  %s3 = sld [smem:[#allocation0]]
  $region22: #{tpu_custom_call.1} parent=0
    _
  %s5 = ssub.s32 1, %s3
  %s6 = scalar_select 0, %s5, %s3
  $region1: #{tpu_custom_call.1} parent=0
    #allocation2 [shape = 'u8[8192]{0}', space=vmem, size = 0x2000, scoped, tag = 'input window, operand 0, single buffered']
    #allocation3 [shape = 's32[1]{0}', space=sflag, size = 0x4, scoped, tag = 'scoped memory for tpu_custom_call.1']
    #allocation4 [shape = 's32[1]{0}', space=sflag, size = 0x4, scoped, tag = 'scoped memory for tpu_custom_call.1']
    #allocation5 [shape = 'u8[8192]{0}', space=vmem, size = 0x2000, scoped, tag = 'output window, operand 0, single buffered']
    %7 = vsyncpa [#allocation3], 0
    %8 = vsyncpa [#allocation4], 0
    // Predicated region
    $region2: #{tpu_custom_call.1} parent=1 // pred_check
      _
    $region3: #{tpu_custom_call.1} parent=1 // pred_check_branch
      %10 = sbr.rel (0) target = $region5
    $region4: #{tpu_custom_call.1} parent=1 // pred_region
      %s12 = ssub.s32 256, 256
      %13 = vsyncadd [#allocation3], %s12
      %s14 = sshll.u32 [#allocation2], 4
      %s15 = int_to_ptr.vmem [resolvable:$true] %s14
      %20 = dma.hbm_to_vmem [thread:$0]  %s0, 256, %s15, [#allocation3], 128, 128, 8
    $region5: #{tpu_custom_call.1} parent=1 // pred_fallthru
      _
    // Predicated region
    $region6: #{tpu_custom_call.1} parent=1 // pred_check
      _
    $region7: #{tpu_custom_call.1} parent=1 // pred_check_branch
      %22 = sbr.rel (0) target = $region9
    $region8: #{tpu_custom_call.1} parent=1 // pred_region
      _
    $region9: #{tpu_custom_call.1} parent=1 // pred_fallthru
      _
    // Predicated region
    $region10: #{tpu_custom_call.1} parent=1 // pred_check
      _
    $region11: #{tpu_custom_call.1} parent=1 // pred_check_branch
      %24 = sbr.rel (0) target = $region13
    $region12: #{tpu_custom_call.1} parent=1 // pred_region
      %25 = dma.done [#allocation3], 256
    $region13: #{tpu_custom_call.1} parent=1 // pred_fallthru
      _
    %v26 = vld [vmem:[#allocation2] sm:$0xff]
    %v27 = vld [vmem:[#allocation2 + $0x8] sm:$0xff]
    %v28 = vld [vmem:[%s1] sm:$0xff]
    %v29 = vld [vmem:[%s1 + $0x8] sm:$0xff]
    %v30 = vadd.f32 %v26, %v28
    %v31 = vadd.f32 %v27, %v29
    %32 = vst [vmem:[#allocation5] sm:$0xff] %v30
    %33 = vst [vmem:[#allocation5 + $0x8] sm:$0xff] %v31
    // Predicated region
    $region14: #{tpu_custom_call.1} parent=1 // pred_check
      _
    $region15: #{tpu_custom_call.1} parent=1 // pred_check_branch
      %35 = sbr.rel (0) target = $region17
    $region16: #{tpu_custom_call.1} parent=1 // pred_region
      %s37 = ssub.s32 256, 256
      %38 = vsyncadd [#allocation4], %s37
      %s39 = sshll.u32 [#allocation5], 4
      %s40 = int_to_ptr.vmem [resolvable:$true] %s39
      %45 = dma.vmem_to_hbm [thread:$0]  %s40, 256, %s2, [#allocation4], 128, 128, 8
    $region17: #{tpu_custom_call.1} parent=1 // pred_fallthru
      _
    // Predicated region
    $region18: #{tpu_custom_call.1} parent=1 // pred_check
      _
    $region19: #{tpu_custom_call.1} parent=1 // pred_check_branch
      %47 = sbr.rel (0) target = $region21
    $region20: #{tpu_custom_call.1} parent=1 // pred_region
      %48 = dma.done [#allocation4], 256
    $region21: #{tpu_custom_call.1} parent=1 // pred_fallthru
      _
    %49 = vsyncpa [#allocation3], 1
    %50 = vsyncpa [#allocation4], 1

</llo_original>
